<compile_context>
chip_gen: v7x
topology: tpu7x:2x2x1
jax: 0.10.0
libtpu: 0.0.40
codegen_flags: <defaults>
</compile_context>

<pallas_src>
import numpy as np
import jax
import jax.numpy as jnp
from jax.experimental import pallas as pl
from jax.experimental.pallas import tpu as pltpu


# ----------------------------------------------------------------------------
# Pallas kernel: fused conv1 -> ELU -> (dropout=id) -> conv2 -> ELU
# ----------------------------------------------------------------------------
def _emotion_kernel(xc_ref, w1_ref, b1_ref, w2_ref, b2_ref, o_ref):
    # xc: (L1, 3)        im2col of the 1-channel input (per batch element)
    # w1: (3, 64)        conv1 weight, [k, c_out]
    # b1: (1, 64)
    # w2: (3, 64, 128)   conv2 weight, [k, c_in, c_out]
    # b2: (1, 128)
    # o : (L2, 128)
    L2 = o_ref.shape[0]

    def elu(z):
        # ELU(alpha=1): z if z > 0 else exp(z) - 1 (clamped so exp never overflows)
        return jnp.where(z > 0.0, z, jnp.exp(jnp.minimum(z, 0.0)) - 1.0)

    # Conv1d(1, 64, 3): one MXU matmul over the K=3 window dim.
    h1 = jnp.dot(xc_ref[...], w1_ref[...], preferred_element_type=jnp.float32)
    h1 = elu(h1 + b1_ref[...])                       # (L1, 64)
    # Dropout(p=0.25) is the identity at inference time.

    # Conv1d(64, 128, 3): 3 shifted (L2,64)@(64,128) MXU matmuls, f32 accumulation.
    acc = jnp.dot(h1[0:L2, :], w2_ref[0], preferred_element_type=jnp.float32)
    acc = acc + jnp.dot(h1[1:1 + L2, :], w2_ref[1], preferred_element_type=jnp.float32)
    acc = acc + jnp.dot(h1[2:2 + L2, :], w2_ref[2], preferred_element_type=jnp.float32)
    h2 = elu(acc + b2_ref[...])                      # (L2, 128)

    o_ref[...] = h2.astype(o_ref.dtype)


# ----------------------------------------------------------------------------
# Wrapper
# ----------------------------------------------------------------------------
def emotion_forward(params, emo):
    """emo: (B, 1, L) float32 -> (B, 128*(L-4)) float32 (matches x.view(B,-1))."""
    B, c_in, L = emo.shape
    assert c_in == 1
    L1, L2 = L - 2, L - 4

    # im2col for conv1 (layout plumbing only; all arithmetic runs in the kernel).
    x = emo[:, 0, :]                                                    # (B, L)
    x_col = jnp.stack([x[:, k:k + L1] for k in range(3)], axis=-1)      # (B, L1, 3)

    out = pl.pallas_call(
        _emotion_kernel,
        out_shape=jax.ShapeDtypeStruct((B, L2, 128), jnp.float32),
        grid=(B,),
        in_specs=[
            pl.BlockSpec((None, L1, 3), lambda b: (b, 0, 0)),     # per-batch input
            pl.BlockSpec((3, 64), lambda b: (0, 0)),              # weights stay resident
            pl.BlockSpec((1, 64), lambda b: (0, 0)),
            pl.BlockSpec((3, 64, 128), lambda b: (0, 0, 0)),
            pl.BlockSpec((1, 128), lambda b: (0, 0)),
        ],
        out_specs=pl.BlockSpec((None, L2, 128), lambda b: (b, 0, 0)),
        compiler_params=pltpu.CompilerParams(dimension_semantics=("parallel",)),
    )(x_col, params["w1m"], params["b1m"], params["w2m"], params["b2m"])

    # PyTorch flattens NCW (B, 128, L2) channel-major: idx = c*L2 + t.
    return jnp.transpose(out, (0, 2, 1)).reshape(B, -1)


# ----------------------------------------------------------------------------
# Parameters (deterministic synthetic, PyTorch Conv1d-default-ish init scales)
# ----------------------------------------------------------------------------
def build_emotion_params(key):
    k1, k2, k3, k4 = jax.random.split(key, 4)
    w1_t = jax.random.uniform(k1, (64, 1, 3), jnp.float32, -1.0, 1.0) / np.sqrt(1 * 3)
    b1 = jax.random.uniform(k2, (64,), jnp.float32, -1.0, 1.0) / np.sqrt(1 * 3)
    w2_t = jax.random.uniform(k3, (128, 64, 3), jnp.float32, -1.0, 1.0) / np.sqrt(64 * 3)
    b2 = jax.random.uniform(k4, (128,), jnp.float32, -1.0, 1.0) / np.sqrt(64 * 3)
    return dict(
        # torch layouts (used by the independent reference)
        w1_t=w1_t, b1=b1, w2_t=w2_t, b2=b2,
        # kernel-friendly layouts (channels last / lane dim)
        w1m=jnp.transpose(w1_t[:, 0, :], (1, 0)),     # (3, 64): [k, c_out]
        b1m=b1.reshape(1, 64),
        w2m=jnp.transpose(w2_t, (2, 1, 0)),           # (3, 64, 128): [k, c_in, c_out]
        b2m=b2.reshape(1, 128),
    )


# ----------------------------------------------------------------------------
# Plain-JAX reference (independent path via lax.conv, torch weight layouts)
# ----------------------------------------------------------------------------
def reference_forward(params, emo):
    x = jax.lax.conv_general_dilated(
        emo, params["w1_t"], window_strides=(1,), padding="VALID",
        dimension_numbers=("NCH", "OIH", "NCH"))
    x = jax.nn.elu(x + params["b1"][None, :, None])
    x = jax.lax.conv_general_dilated(
        x, params["w2_t"], window_strides=(1,), padding="VALID",
        dimension_numbers=("NCH", "OIH", "NCH"))
    x = jax.nn.elu(x + params["b2"][None, :, None])
    return x.reshape(x.shape[0], -1)


if __name__ == "__main__":
    key = jax.random.PRNGKey(0)
    k_params, k_emo = jax.random.split(key)
    params = build_emotion_params(k_params)

    batch, seq = 2, 30
    emo = jax.random.normal(k_emo, (batch, 1, seq), jnp.float32)

    out = emotion_forward(params, emo)
    out = jax.block_until_ready(out)

    assert out.shape == (batch, 128 * (seq - 4)), out.shape
    assert bool(jnp.all(jnp.isfinite(out)))

    ref = reference_forward(params, emo)
    np.testing.assert_allclose(np.asarray(out), np.asarray(ref), rtol=2e-2, atol=2e-2)

    print("KERNEL_OK")
</pallas_src>

<mosaic_0001>
module attributes {stable_mosaic.version = 11 : i64} {
  func.func @_emotion_kernel(%arg0: i32, %arg1: memref<1x28x3xf32, #tpu.memory_space<vmem>>, %arg2: memref<3x64xf32, #tpu.memory_space<vmem>>, %arg3: memref<1x64xf32, #tpu.memory_space<vmem>>, %arg4: memref<3x64x128xf32, #tpu.memory_space<vmem>>, %arg5: memref<1x128xf32, #tpu.memory_space<vmem>>, %arg6: memref<1x26x128xf32, #tpu.memory_space<vmem>>) attributes {dimension_semantics = [#tpu.dimension_semantics<parallel>], iteration_bounds = array<i64: 2>, scalar_prefetch = 0 : i64, scratch_operands = 0 : i64, tpu.core_type = #tpu.core_type<tc>, window_params = [{transform_indices = @transform_0, window_bounds = array<i64: 1, 28, 3>}, {pipeline_mode = #tpu.pipeline_mode<synchronous>, transform_indices = @transform_1, window_bounds = array<i64: 3, 64>}, {pipeline_mode = #tpu.pipeline_mode<synchronous>, transform_indices = @transform_2, window_bounds = array<i64: 1, 64>}, {pipeline_mode = #tpu.pipeline_mode<synchronous>, transform_indices = @transform_3, window_bounds = array<i64: 3, 64, 128>}, {pipeline_mode = #tpu.pipeline_mode<synchronous>, transform_indices = @transform_4, window_bounds = array<i64: 1, 128>}, {transform_indices = @transform_5, window_bounds = array<i64: 1, 26, 128>}]} {
    %c0 = arith.constant 0 : index
    %c0_0 = arith.constant 0 : index
    %c0_1 = arith.constant 0 : index
    %0 = vector.load %arg1[%c0, %c0_0, %c0_1] : memref<1x28x3xf32, #tpu.memory_space<vmem>>, vector<1x28x3xf32>
    %1 = vector.shape_cast %0 : vector<1x28x3xf32> to vector<28x3xf32>
    %c0_2 = arith.constant 0 : index
    %c0_3 = arith.constant 0 : index
    %2 = vector.load %arg2[%c0_2, %c0_3] : memref<3x64xf32, #tpu.memory_space<vmem>>, vector<3x64xf32>
    %cst = arith.constant dense<0.000000e+00> : vector<28x64xf32>
    %3 = tpu.matmul %1, %2, %cst {dimension_numbers = #tpu.dot_dimension_numbers<[1], [0], [0], [1], [0, 0, 1, 1], [], []>} : vector<28x3xf32>, vector<3x64xf32>, vector<28x64xf32> -> vector<28x64xf32>
    %c0_4 = arith.constant 0 : index
    %c0_5 = arith.constant 0 : index
    %4 = vector.load %arg3[%c0_4, %c0_5] : memref<1x64xf32, #tpu.memory_space<vmem>>, vector<1x64xf32>
    %5 = vector.broadcast %4 : vector<1x64xf32> to vector<28x64xf32>
    %6 = arith.addf %3, %5 : vector<28x64xf32>
    %cst_6 = arith.constant 0.000000e+00 : f32
    %7 = vector.broadcast %cst_6 : f32 to vector<28x64xf32>
    %8 = arith.cmpf ogt, %6, %7 : vector<28x64xf32>
    %cst_7 = arith.constant 0.000000e+00 : f32
    %9 = vector.broadcast %cst_7 : f32 to vector<28x64xf32>
    %10 = arith.minimumf %6, %9 : vector<28x64xf32>
    %11 = math.exp %10 : vector<28x64xf32>
    %cst_8 = arith.constant 1.000000e+00 : f32
    %12 = vector.broadcast %cst_8 : f32 to vector<28x64xf32>
    %13 = arith.subf %11, %12 : vector<28x64xf32>
    %14 = arith.select %8, %6, %13 : vector<28x64xi1>, vector<28x64xf32>
    %15 = vector.extract_strided_slice %14 {offsets = [0, 0], sizes = [26, 64], strides = [1, 1]} : vector<28x64xf32> to vector<26x64xf32>
    %c0_9 = arith.constant 0 : index
    %c0_10 = arith.constant 0 : index
    %c0_11 = arith.constant 0 : index
    %16 = vector.load %arg4[%c0_9, %c0_10, %c0_11] : memref<3x64x128xf32, #tpu.memory_space<vmem>>, vector<1x64x128xf32>
    %17 = vector.shape_cast %16 : vector<1x64x128xf32> to vector<64x128xf32>
    %cst_12 = arith.constant dense<0.000000e+00> : vector<26x128xf32>
    %18 = tpu.matmul %15, %17, %cst_12 {dimension_numbers = #tpu.dot_dimension_numbers<[1], [0], [0], [1], [0, 0, 1, 1], [], []>} : vector<26x64xf32>, vector<64x128xf32>, vector<26x128xf32> -> vector<26x128xf32>
    %19 = vector.extract_strided_slice %14 {offsets = [1, 0], sizes = [26, 64], strides = [1, 1]} : vector<28x64xf32> to vector<26x64xf32>
    %c1 = arith.constant 1 : index
    %c0_13 = arith.constant 0 : index
    %c0_14 = arith.constant 0 : index
    %20 = vector.load %arg4[%c1, %c0_13, %c0_14] : memref<3x64x128xf32, #tpu.memory_space<vmem>>, vector<1x64x128xf32>
    %21 = vector.shape_cast %20 : vector<1x64x128xf32> to vector<64x128xf32>
    %cst_15 = arith.constant dense<0.000000e+00> : vector<26x128xf32>
    %22 = tpu.matmul %19, %21, %cst_15 {dimension_numbers = #tpu.dot_dimension_numbers<[1], [0], [0], [1], [0, 0, 1, 1], [], []>} : vector<26x64xf32>, vector<64x128xf32>, vector<26x128xf32> -> vector<26x128xf32>
    %23 = arith.addf %18, %22 : vector<26x128xf32>
    %24 = vector.extract_strided_slice %14 {offsets = [2, 0], sizes = [26, 64], strides = [1, 1]} : vector<28x64xf32> to vector<26x64xf32>
    %c2 = arith.constant 2 : index
    %c0_16 = arith.constant 0 : index
    %c0_17 = arith.constant 0 : index
    %25 = vector.load %arg4[%c2, %c0_16, %c0_17] : memref<3x64x128xf32, #tpu.memory_space<vmem>>, vector<1x64x128xf32>
    %26 = vector.shape_cast %25 : vector<1x64x128xf32> to vector<64x128xf32>
    %cst_18 = arith.constant dense<0.000000e+00> : vector<26x128xf32>
    %27 = tpu.matmul %24, %26, %cst_18 {dimension_numbers = #tpu.dot_dimension_numbers<[1], [0], [0], [1], [0, 0, 1, 1], [], []>} : vector<26x64xf32>, vector<64x128xf32>, vector<26x128xf32> -> vector<26x128xf32>
    %28 = arith.addf %23, %27 : vector<26x128xf32>
    %c0_19 = arith.constant 0 : index
    %c0_20 = arith.constant 0 : index
    %29 = vector.load %arg5[%c0_19, %c0_20] : memref<1x128xf32, #tpu.memory_space<vmem>>, vector<1x128xf32>
    %30 = vector.broadcast %29 : vector<1x128xf32> to vector<26x128xf32>
    %31 = arith.addf %28, %30 : vector<26x128xf32>
    %cst_21 = arith.constant 0.000000e+00 : f32
    %32 = vector.broadcast %cst_21 : f32 to vector<26x128xf32>
    %33 = arith.cmpf ogt, %31, %32 : vector<26x128xf32>
    %cst_22 = arith.constant 0.000000e+00 : f32
    %34 = vector.broadcast %cst_22 : f32 to vector<26x128xf32>
    %35 = arith.minimumf %31, %34 : vector<26x128xf32>
    %36 = math.exp %35 : vector<26x128xf32>
    %cst_23 = arith.constant 1.000000e+00 : f32
    %37 = vector.broadcast %cst_23 : f32 to vector<26x128xf32>
    %38 = arith.subf %36, %37 : vector<26x128xf32>
    %39 = arith.select %33, %31, %38 : vector<26x128xi1>, vector<26x128xf32>
    %c0_24 = arith.constant 0 : index
    %c0_25 = arith.constant 0 : index
    %c0_26 = arith.constant 0 : index
    %40 = vector.load %arg6[%c0_24, %c0_25, %c0_26] : memref<1x26x128xf32, #tpu.memory_space<vmem>>, vector<1x26x128xf32>
    %41 = vector.shape_cast %40 : vector<1x26x128xf32> to vector<26x128xf32>
    %42 = vector.shape_cast %39 : vector<26x128xf32> to vector<1x26x128xf32>
    tpu.vector_store %arg6[%c0_24, %c0_25, %c0_26], %42 {strides = array<i32>} : memref<1x26x128xf32, #tpu.memory_space<vmem>>, vector<1x26x128xf32>,
    return
  }
  func.func @transform_0(%arg0: i32) -> (i32, i32, i32) {
    %c0_i32 = arith.constant 0 : i32
    %c0_i32_0 = arith.constant 0 : i32
    %c0_i32_1 = arith.constant 0 : i32
    return %arg0, %c0_i32, %c0_i32_0 : i32, i32, i32
  }
  func.func @transform_1(%arg0: i32) -> (i32, i32) {
    %c0_i32 = arith.constant 0 : i32
    %c0_i32_0 = arith.constant 0 : i32
    %c0_i32_1 = arith.constant 0 : i32
    return %c0_i32, %c0_i32_0 : i32, i32
  }
  func.func @transform_2(%arg0: i32) -> (i32, i32) {
    %c0_i32 = arith.constant 0 : i32
    %c0_i32_0 = arith.constant 0 : i32
    %c0_i32_1 = arith.constant 0 : i32
    return %c0_i32, %c0_i32_0 : i32, i32
  }
  func.func @transform_3(%arg0: i32) -> (i32, i32, i32) {
    %c0_i32 = arith.constant 0 : i32
    %c0_i32_0 = arith.constant 0 : i32
    %c0_i32_1 = arith.constant 0 : i32
    %c0_i32_2 = arith.constant 0 : i32
    return %c0_i32, %c0_i32_0, %c0_i32_1 : i32, i32, i32
  }
  func.func @transform_4(%arg0: i32) -> (i32, i32) {
    %c0_i32 = arith.constant 0 : i32
    %c0_i32_0 = arith.constant 0 : i32
    %c0_i32_1 = arith.constant 0 : i32
    return %c0_i32, %c0_i32_0 : i32, i32
  }
  func.func @transform_5(%arg0: i32) -> (i32, i32, i32) {
    %c0_i32 = arith.constant 0 : i32
    %c0_i32_0 = arith.constant 0 : i32
    %c0_i32_1 = arith.constant 0 : i32
    return %arg0, %c0_i32, %c0_i32_0 : i32, i32, i32
  }
}

</mosaic_0001>

<llo_original>
// kernel: tpu_custom_call.1
$region0: #{tpu_custom_call.1}
  #allocation0 [shape = 'u32[]', space=smem, size = 0x4, offset = 0x4, fixed_abs, tag = 'smem constant byte address 0x4 - core index']
  #allocation1 [shape = 'u32[144,128]{1,0:T(1,128)}', space=vmem, size = 0x12000, scoped, tag = 'internal scratch']
  %s0 = inlined_call_operand.vmem [shape: f32[2,28,3], index: 0, kind: input, shape index: {}]
  %s1 = inlined_call_operand.vmem [shape: f32[3,64], index: 1, kind: input, shape index: {}]
  %s2 = inlined_call_operand.vmem [shape: f32[1,64], index: 2, kind: input, shape index: {}]
  %s3 = inlined_call_operand.hbm [shape: f32[3,64,128], index: 3, kind: input, shape index: {}]
  %s4 = inlined_call_operand.vmem [shape: f32[1,128], index: 4, kind: input, shape index: {}]
  %s5 = inlined_call_operand.vmem [shape: f32[2,26,128], index: 5, kind: output, shape index: {}]
  %s6 = sld [smem:[#allocation0]]
  $region57: #{tpu_custom_call.1} parent=0
    _
  %s8 = ssub.s32 1, %s6
  %s9 = scalar_select 0, %s8, %s6
  $region1: #{tpu_custom_call.1} parent=0
    #allocation2 [shape = 'u8[98304]{0}', space=vmem, size = 0x18000, scoped, tag = 'input window, operand 3, single buffered']
    #allocation3 [shape = 's32[2]{0}', space=sflag, size = 0x8, scoped, tag = 'scoped memory for tpu_custom_call.1']
    %10 = vsyncpa [#allocation3], 0
    loop: start=0, step=1, limit=4
    $region2: #{tpu_custom_call.1} parent=1 // loop_pre_header
      _
    $region3: #{tpu_custom_call.1} parent=1 // loop_header
      %s12 = sphi 0, %s16
      %p13 = scmp.ge.s32.totalorder %s12, 4
      %s22 = sphi 0, %s24
      %s25 = sphi 0, %s22
      %s26 = sphi 0, %s25
      %s42 = sphi 0, %s26
      %s46 = sphi 0, %s46
      %s48 = sphi 0, %s46
      %s49 = sphi 0, %s48
      %s63 = sphi 0, %s49
      %s67 = sphi 0, %s67
      %s69 = sphi 0, %s67
      %s70 = sphi 0, %s69
      %s84 = sphi 0, %s70
      %s88 = sphi 0, %s88
      %s90 = sphi 0, %s88
      %s91 = sphi 0, %s90
      %s105 = sphi 0, %s91
      %s109 = sphi 0, %s109
      %s111 = sphi 0, %s109
      %s112 = sphi 0, %s111
      %s126 = sphi 0, %s112
      %s132 = sphi 0, %s134
      %s135 = sphi 0, %s132
      %s136 = sphi 0, %s135
      %s152 = sphi 0, %s136
    $region4: #{tpu_custom_call.1} parent=1 // loop_header_branch
      %15 = sbr.rel (%p13) target = $region8
    $region5: #{tpu_custom_call.1} parent=1 // loop_body
      %s17 = ssub.s32 %s12, 1
      %s18 = ssub.s32 %s12, 2
      %s19 = sadd.s32 %s12, 1
      %s20 = ssub.s32 %s12, %s19
      %p21 = scmp.eq.s32.totalorder %s20, 0
      %s23 = sadd.s32 %s22, 1
      %s24 = scalar_select %p21, %s22, %s23
      %p27 = pneg %p21
      %p28 = scmp.eq.s32.totalorder %s12, 1
      %p29 = por %p27, %p28
      %p30 = scmp.ne.s32.totalorder %s22, %s25
      %p31 = scmp.eq.s32.totalorder %s12, 0
      %p32 = por %p30, %p31
      %p33 = scmp.ne.s32.totalorder %s22, %s25
      %p34 = scmp.eq.s32.totalorder %s17, 1
      %p35 = por %p33, %p34
      %p36 = scmp.ne.s32.totalorder %s25, %s26
      %p37 = scmp.eq.s32.totalorder %s17, 0
      %p38 = por %p36, %p37
      %p39 = scmp.ne.s32.totalorder %s25, %s26
      %p40 = scmp.eq.s32.totalorder %s18, 1
      %p41 = por %p39, %p40
      %p43 = scmp.ne.s32.totalorder %s26, %s42
      %p44 = scmp.eq.s32.totalorder %s18, 0
      %p45 = por %p43, %p44
      %s47 = sadd.s32 %s46, 1
      %p50 = scmp.eq.s32.totalorder %s12, 1
      %p51 = scmp.ne.s32.totalorder %s46, %s48
      %p52 = scmp.eq.s32.totalorder %s12, 0
      %p53 = por %p51, %p52
      %p54 = scmp.ne.s32.totalorder %s46, %s48
      %p55 = scmp.eq.s32.totalorder %s17, 1
      %p56 = por %p54, %p55
      %p57 = scmp.ne.s32.totalorder %s48, %s49
      %p58 = scmp.eq.s32.totalorder %s17, 0
      %p59 = por %p57, %p58
      %p60 = scmp.ne.s32.totalorder %s48, %s49
      %p61 = scmp.eq.s32.totalorder %s18, 1
      %p62 = por %p60, %p61
      %p64 = scmp.ne.s32.totalorder %s49, %s63
      %p65 = scmp.eq.s32.totalorder %s18, 0
      %p66 = por %p64, %p65
      %s68 = sadd.s32 %s67, 1
      %p71 = scmp.eq.s32.totalorder %s12, 1
      %p72 = scmp.ne.s32.totalorder %s67, %s69
      %p73 = scmp.eq.s32.totalorder %s12, 0
      %p74 = por %p72, %p73
      %p75 = scmp.ne.s32.totalorder %s67, %s69
      %p76 = scmp.eq.s32.totalorder %s17, 1
      %p77 = por %p75, %p76
      %p78 = scmp.ne.s32.totalorder %s69, %s70
      %p79 = scmp.eq.s32.totalorder %s17, 0
      %p80 = por %p78, %p79
      %p81 = scmp.ne.s32.totalorder %s69, %s70
      %p82 = scmp.eq.s32.totalorder %s18, 1
      %p83 = por %p81, %p82
      %p85 = scmp.ne.s32.totalorder %s70, %s84
      %p86 = scmp.eq.s32.totalorder %s18, 0
      %p87 = por %p85, %p86
      %s89 = sadd.s32 %s88, 1
      %p92 = scmp.eq.s32.totalorder %s12, 1
      %p93 = scmp.ne.s32.totalorder %s88, %s90
      %p94 = scmp.eq.s32.totalorder %s12, 0
      %p95 = por %p93, %p94
      %p96 = scmp.ne.s32.totalorder %s88, %s90
      %p97 = scmp.eq.s32.totalorder %s17, 1
      %p98 = por %p96, %p97
      %p99 = scmp.ne.s32.totalorder %s90, %s91
      %p100 = scmp.eq.s32.totalorder %s17, 0
      %p101 = por %p99, %p100
      %p102 = scmp.ne.s32.totalorder %s90, %s91
      %p103 = scmp.eq.s32.totalorder %s18, 1
      %p104 = por %p102, %p103
      %p106 = scmp.ne.s32.totalorder %s91, %s105
      %p107 = scmp.eq.s32.totalorder %s18, 0
      %p108 = por %p106, %p107
      %s110 = sadd.s32 %s109, 1
      %p113 = scmp.eq.s32.totalorder %s12, 1
      %p114 = scmp.ne.s32.totalorder %s109, %s111
      %p115 = scmp.eq.s32.totalorder %s12, 0
      %p116 = por %p114, %p115
      %p117 = scmp.ne.s32.totalorder %s109, %s111
      %p118 = scmp.eq.s32.totalorder %s17, 1
      %p119 = por %p117, %p118
      %p120 = scmp.ne.s32.totalorder %s111, %s112
      %p121 = scmp.eq.s32.totalorder %s17, 0
      %p122 = por %p120, %p121
      %p123 = scmp.ne.s32.totalorder %s111, %s112
      %p124 = scmp.eq.s32.totalorder %s18, 1
      %p125 = por %p123, %p124
      %p127 = scmp.ne.s32.totalorder %s112, %s126
      %p128 = scmp.eq.s32.totalorder %s18, 0
      %p129 = por %p127, %p128
      %s130 = ssub.s32 %s12, %s19
      %p131 = scmp.eq.s32.totalorder %s130, 0
      %s133 = sadd.s32 %s132, 1
      %s134 = scalar_select %p131, %s132, %s133
      %p137 = pneg %p131
      %p138 = scmp.eq.s32.totalorder %s12, 1
      %p139 = por %p137, %p138
      %p140 = scmp.ne.s32.totalorder %s132, %s135
      %p141 = scmp.eq.s32.totalorder %s12, 0
      %p142 = por %p140, %p141
      %p143 = scmp.ne.s32.totalorder %s132, %s135
      %p144 = scmp.eq.s32.totalorder %s17, 1
      %p145 = por %p143, %p144
      %p146 = scmp.ne.s32.totalorder %s135, %s136
      %p147 = scmp.eq.s32.totalorder %s17, 0
      %p148 = por %p146, %p147
      %p149 = scmp.ne.s32.totalorder %s135, %s136
      %p150 = scmp.eq.s32.totalorder %s18, 1
      %p151 = por %p149, %p150
      %p153 = scmp.ne.s32.totalorder %s136, %s152
      %p154 = scmp.eq.s32.totalorder %s18, 0
      %p155 = por %p153, %p154
      %p156 = scmp.le.s32.totalorder 1, %s12
      %p157 = scmp.lt.s32.totalorder %s12, 3
      %p158 = pnand %p156, %p157
      %p159 = pneg %p158
      // Predicated region
      $region9: #{tpu_custom_call.1} parent=5 // pred_check
        _
      $region10: #{tpu_custom_call.1} parent=5 // pred_check_branch
        %161 = sbr.rel (%p158) target = $region12
      $region11: #{tpu_custom_call.1} parent=5 // pred_region
        %s162 = ssub.s32 %s12, 1
        // Predicated region
        $region13: #{tpu_custom_call.1} parent=11 // pred_check
          %p163 = pneg %p59
        $region14: #{tpu_custom_call.1} parent=11 // pred_check_branch
          %165 = sbr.rel (%p163) target = $region16
        $region15: #{tpu_custom_call.1} parent=11 // pred_region
          _
        $region16: #{tpu_custom_call.1} parent=11 // pred_fallthru
          _
        // Predicated region
        $region17: #{tpu_custom_call.1} parent=11 // pred_check
          %p166 = pneg %p80
        $region18: #{tpu_custom_call.1} parent=11 // pred_check_branch
          %168 = sbr.rel (%p166) target = $region20
        $region19: #{tpu_custom_call.1} parent=11 // pred_region
          _
        $region20: #{tpu_custom_call.1} parent=11 // pred_fallthru
          _
        // Predicated region
        $region21: #{tpu_custom_call.1} parent=11 // pred_check
          %p169 = pneg %p101
        $region22: #{tpu_custom_call.1} parent=11 // pred_check_branch
          %171 = sbr.rel (%p169) target = $region24
        $region23: #{tpu_custom_call.1} parent=11 // pred_region
          %s173 = ssub.s32 3072, 3072
          %174 = vsyncadd [#allocation3], %s173
          %s175 = sshll.u32 [#allocation2], 4
          %s176 = int_to_ptr.vmem [resolvable:$true] %s175
          %181 = dma.hbm_to_vmem [thread:$0]  %s3, 3072, %s176, [#allocation3], 128, 128, 8
        $region24: #{tpu_custom_call.1} parent=11 // pred_fallthru
          _
        // Predicated region
        $region25: #{tpu_custom_call.1} parent=11 // pred_check
          %p182 = pneg %p122
        $region26: #{tpu_custom_call.1} parent=11 // pred_check_branch
          %184 = sbr.rel (%p182) target = $region28
        $region27: #{tpu_custom_call.1} parent=11 // pred_region
          _
        $region28: #{tpu_custom_call.1} parent=11 // pred_fallthru
          _
      $region12: #{tpu_custom_call.1} parent=5 // pred_fallthru
        _
      %p185 = scmp.lt.s32.totalorder %s12, 2
      // Predicated region
      $region29: #{tpu_custom_call.1} parent=5 // pred_check
        %p186 = pneg %p185
      $region30: #{tpu_custom_call.1} parent=5 // pred_check_branch
        %188 = sbr.rel (%p186) target = $region32
      $region31: #{tpu_custom_call.1} parent=5 // pred_region
        // Predicated region
        $region33: #{tpu_custom_call.1} parent=31 // pred_check
          %p189 = pneg %p32
        $region34: #{tpu_custom_call.1} parent=31 // pred_check_branch
          %191 = sbr.rel (%p189) target = $region36
        $region35: #{tpu_custom_call.1} parent=31 // pred_region
          %p192 = scmp.lt.s32.totalorder %s12, 1
          %s193 = scalar_select %p192, %s12, 1
          %s194 = smul.addr %s193, 4
          %s195 = smul.addr %s194, 8
          %s196 = scalar_lea.vmem %s0, %s195
        $region36: #{tpu_custom_call.1} parent=31 // pred_fallthru
          _
      $region32: #{tpu_custom_call.1} parent=5 // pred_fallthru
        _
      %p197 = scmp.le.s32.totalorder 1, %s12
      %p198 = scmp.lt.s32.totalorder %s12, 3
      %p199 = pnand %p197, %p198
      %p200 = pneg %p199
      // Predicated region
      $region37: #{tpu_custom_call.1} parent=5 // pred_check
        _
      $region38: #{tpu_custom_call.1} parent=5 // pred_check_branch
        %202 = sbr.rel (%p199) target = $region40
      $region39: #{tpu_custom_call.1} parent=5 // pred_region
        %s203 = ssub.s32 %s12, 1
        // Predicated region
        $region41: #{tpu_custom_call.1} parent=39 // pred_check
          %p204 = pneg %p101
        $region42: #{tpu_custom_call.1} parent=39 // pred_check_branch
          %206 = sbr.rel (%p204) target = $region44
        $region43: #{tpu_custom_call.1} parent=39 // pred_region
          %207 = dma.done [#allocation3], 3072
        $region44: #{tpu_custom_call.1} parent=39 // pred_fallthru
          _
        %p208 = scmp.lt.s32.totalorder %s17, 1
        %s209 = scalar_select %p208, %s17, 1
        %s210 = smul.addr %s209, 4
        %s211 = smul.addr %s210, 8
        %s212 = scalar_lea.vmem %s0, %s211
        %p213 = pneg %p38
        %p214 = pneg %p35
        %p215 = pneg %p59
        %p216 = pneg %p56
        %p217 = pneg %p80
        %p218 = pneg %p77
        %p219 = pneg %p101
        %p220 = pneg %p98
        %p221 = pneg %p122
        %p222 = pneg %p119
        %p223 = pneg %p148
        %p224 = pneg %p145
        %p225 = scmp.lt.s32.totalorder %s17, 1
        %s226 = scalar_select %p225, %s17, 1
        %s227 = smul.addr %s226, 4
        %s228 = smul.addr %s227, 8
        %s229 = scalar_lea.vmem %s5, %s228
        %p230 = scmp.lt.s32.totalorder %s17, 1
        %s231 = scalar_select %p230, %s17, 1
        %s232 = smul.addr %s231, 4
        %s233 = smul.addr %s232, 8
        %s234 = scalar_lea.vmem %s0, %s233
        %p235 = scmp.lt.s32.totalorder %s17, 1
        %s236 = scalar_select %p235, %s17, 1
        %s237 = smul.addr %s236, 4
        %s238 = smul.addr %s237, 8
        %s239 = scalar_lea.vmem %s5, %s238
        %v240 = vld [vmem:[%s234] sm:$0xff]
        %v241 = vld [vmem:[%s234 + $0x8] sm:$0xff]
        %v242 = vld [vmem:[%s234 + $0x10] sm:$0xff]
        %v243 = vld [vmem:[%s234 + $0x18] sm:$0xf]
        %v244 = vld [vmem:[%s1] sm:$0x7]
        %v245 = vld [vmem:[%s2] sm:$0x1]
        %v247 = vlaneseq
        %v248 = vshrl.u32 %v247, 7
        %v249 = vsub.s32 0, %v248
        %v250 = vrot.slane %v245, %v249
        %vm252 = vcmask 23552
        %v254 = vsel %vm252, %v240, 0
        %v257 = vsel %vm252, %v241, 0
        %v260 = vsel %vm252, %v242, 0
        %v263 = vsel %vm252, %v243, 0
        %vm265 = vcmask 1042432
        %v267 = vsel %vm265, %v244, 0
        %269 = vmatprep.subr.mxu0 0.0
        %270 = vmatpush1.msra.mxu0 %v267
        %271 = vmatprep.subr.mxu0 0.0
        %272 = vmatpush1.msra.mxu0 0.0
        %273 = vmatprep.subr.mxu0 0.0
        %274 = vmatpush1.msra.mxu0 0.0
        %275 = vmatprep.subr.mxu0 0.0
        %276 = vmatpush1.msra.mxu0 0.0
        %277 = vmatprep.subr.mxu0 0.0
        %278 = vmatpush1.msra.mxu0 0.0
        %279 = vmatprep.subr.mxu0 0.0
        %280 = vmatpush1.msra.mxu0 0.0
        %281 = vmatprep.subr.mxu0 0.0
        %282 = vmatpush1.msra.mxu0 0.0
        %283 = vmatprep.subr.mxu0 0.0
        %284 = vmatpush1.msra.mxu0 0.0
        %285 = vmatprep.subr.mxu0 0.0
        %286 = vmatpush1.msra.mxu0 0.0
        %287 = vmatprep.subr.mxu0 0.0
        %288 = vmatpush1.msra.mxu0 0.0
        %289 = vmatprep.subr.mxu0 0.0
        %290 = vmatpush1.msra.mxu0 0.0
        %291 = vmatprep.subr.mxu0 0.0
        %292 = vmatpush1.msra.mxu0 0.0
        %293 = vmatprep.subr.mxu0 0.0
        %294 = vmatpush1.msra.mxu0 0.0
        %295 = vmatprep.subr.mxu0 0.0
        %296 = vmatpush1.msra.mxu0 0.0
        %297 = vmatprep.subr.mxu0 0.0
        %298 = vmatpush1.msra.mxu0 0.0
        %299 = vmatprep.subr.mxu0 0.0
        %300 = vmatpush1.msra.mxu0 0.0
        %301 = vmatprep.subr.mxu0 0.0
        %302 = vmatpush1.msra.mxu0 0.0
        %303 = vmatprep.subr.mxu0 0.0
        %304 = vmatpush1.msra.mxu0 0.0
        %305 = vmatprep.subr.mxu0 0.0
        %306 = vmatpush1.msra.mxu0 0.0
        %307 = vmatprep.subr.mxu0 0.0
        %308 = vmatpush1.msra.mxu0 0.0
        %309 = vmatprep.subr.mxu0 0.0
        %310 = vmatpush1.msra.mxu0 0.0
        %311 = vmatprep.subr.mxu0 0.0
        %312 = vmatpush1.msra.mxu0 0.0
        %313 = vmatprep.subr.mxu0 0.0
        %314 = vmatpush1.msra.mxu0 0.0
        %315 = vmatprep.subr.mxu0 0.0
        %316 = vmatpush1.msra.mxu0 0.0
        %317 = vmatprep.subr.mxu0 0.0
        %318 = vmatpush1.msra.mxu0 0.0
        %319 = vmatprep.subr.mxu0 0.0
        %320 = vmatpush1.msra.mxu0 0.0
        %321 = vmatprep.subr.mxu0 0.0
        %322 = vmatpush1.msra.mxu0 0.0
        %323 = vmatprep.subr.mxu0 0.0
        %324 = vmatpush1.msra.mxu0 0.0
        %325 = vmatprep.subr.mxu0 0.0
        %326 = vmatpush1.msra.mxu0 0.0
        %327 = vmatprep.subr.mxu0 0.0
        %328 = vmatpush1.msra.mxu0 0.0
        %329 = vmatprep.subr.mxu0 0.0
        %330 = vmatpush1.msra.mxu0 0.0
        %331 = vmatprep.subr.mxu0 0.0
        %332 = vmatpush1.msra.mxu0 0.0
        %333 = vmatprep.mubr.f32.mxu0 0.0
        %334 = vmatmul.mubr.f32.gmra.mrb[0].mxu0 %v254
        %v335 = vpop.f32.mrb[0].mxu0
        %v336 = vadd.f32 %v250, %v335
        %v337 = vpop.f32.mrb[0].mxu0
        %338 = vmatprep.mubr.f32.mxu0 0.0
        %339 = vmatmul.mubr.f32.gmra.mrb[0].mxu0 %v257
        %v340 = vpop.f32.mrb[0].mxu0
        %v341 = vadd.f32 %v250, %v340
        %v342 = vpop.f32.mrb[0].mxu0
        %343 = vmatprep.mubr.f32.mxu0 0.0
        %344 = vmatmul.mubr.f32.gmra.mrb[0].mxu0 %v260
        %v345 = vpop.f32.mrb[0].mxu0
        %v346 = vadd.f32 %v250, %v345
        %v347 = vpop.f32.mrb[0].mxu0
        %348 = vmatprep.mubr.f32.mxu0 0.0
        %349 = vmatmul.mubr.f32.gmra.mrb[0].mxu0 %v263
        %v350 = vpop.f32.mrb[0].mxu0
        %v351 = vadd.f32 %v250, %v350
        %v352 = vpop.f32.mrb[0].mxu0
        %353 = vdwg.mxu0
        %vm354 = vcmp.gt.f32.partialorder %v336, 0.0
        %vm355 = vcmp.gt.f32.partialorder %v341, 0.0
        %vm356 = vcmp.gt.f32.partialorder %v346, 0.0
        %vm357 = vcmp.gt.f32.partialorder %v351, 0.0
        %v358 = vmin.f32 %v336, 0.0
        %v359 = vmin.f32 %v341, 0.0
        %v360 = vmin.f32 %v346, 0.0
        %v361 = vmin.f32 %v351, 0.0
        %v362 = vmul.f32 %v358, 1.442695
        %v363 = vpow.pop %v362
        %v364 = vmul.f32 %v359, 1.442695
        %v365 = vpow.pop %v364
        %v366 = vmul.f32 %v360, 1.442695
        %v367 = vpow.pop %v366
        %v368 = vmul.f32 %v361, 1.442695
        %v369 = vpow.pop %v368
        %v370 = vsub.f32 %v363, 1.0
        %v371 = vsub.f32 %v365, 1.0
        %v372 = vsub.f32 %v367, 1.0
        %v373 = vsub.f32 %v369, 1.0
        %v374 = vsel %vm354, %v336, %v370
        %v375 = vsel %vm355, %v341, %v371
        %v376 = vsel %vm356, %v346, %v372
        %v377 = vsel %vm357, %v351, %v373
        %v378 = vld [vmem:[#allocation2] sm:$0xff]
        %v379 = vld [vmem:[#allocation2 + $0x8] sm:$0xff]
        %v380 = vld [vmem:[#allocation2 + $0x10] sm:$0xff]
        %v381 = vld [vmem:[#allocation2 + $0x18] sm:$0xff]
        %v382 = vld [vmem:[#allocation2 + $0x20] sm:$0xff]
        %v383 = vld [vmem:[#allocation2 + $0x28] sm:$0xff]
        %v384 = vld [vmem:[#allocation2 + $0x30] sm:$0xff]
        %v385 = vld [vmem:[#allocation2 + $0x38] sm:$0xff]
        %s386 = scalar_lea.vmem [#allocation2], 64
        %v387 = vld [vmem:[%s386] sm:$0xff]
        %v388 = vld [vmem:[%s386 + $0x8] sm:$0xff]
        %v389 = vld [vmem:[%s386 + $0x10] sm:$0xff]
        %v390 = vld [vmem:[%s386 + $0x18] sm:$0xff]
        %v391 = vld [vmem:[%s386 + $0x20] sm:$0xff]
        %v392 = vld [vmem:[%s386 + $0x28] sm:$0xff]
        %v393 = vld [vmem:[%s386 + $0x30] sm:$0xff]
        %v394 = vld [vmem:[%s386 + $0x38] sm:$0xff]
        %vm399 = vcmask 1046528
        %v400 = vrot.slane %v374, 1
        %v401 = vrot.slane %v375, 1
        %v402 = vsel %vm399, %v400, %v401
        %v403 = vrot.slane %v376, 1
        %v404 = vsel %vm399, %v401, %v403
        %v405 = vrot.slane %v377, 1
        %v406 = vsel %vm399, %v403, %v405
        %vm407 = vcmask 523264
        %v408 = vsel %vm407, %v402, 0
        %v410 = vsel %vm407, %v404, 0
        %v412 = vsel %vm407, %v406, 0
        %v414 = vsel %vm407, %v405, 0
        %416 = vmatprep.subr.mxu0 0.0
        %417 = vmatpush1.msra.mxu0 %v387
        %418 = vmatprep.subr.mxu0 0.0
        %419 = vmatpush1.msra.mxu0 %v388
        %420 = vmatprep.subr.mxu0 0.0
        %421 = vmatpush1.msra.mxu0 %v389
        %422 = vmatprep.subr.mxu0 0.0
        %423 = vmatpush1.msra.mxu0 %v390
        %424 = vmatprep.subr.mxu0 0.0
        %425 = vmatpush1.msra.mxu0 %v391
        %426 = vmatprep.subr.mxu0 0.0
        %427 = vmatpush1.msra.mxu0 %v392
        %428 = vmatprep.subr.mxu0 0.0
        %429 = vmatpush1.msra.mxu0 %v393
        %430 = vmatprep.subr.mxu0 0.0
        %431 = vmatpush1.msra.mxu0 %v394
        %432 = vmatprep.subr.mxu0 0.0
        %433 = vmatpush1.msra.mxu0 0.0
        %434 = vmatprep.subr.mxu0 0.0
        %435 = vmatpush1.msra.mxu0 0.0
        %436 = vmatprep.subr.mxu0 0.0
        %437 = vmatpush1.msra.mxu0 0.0
        %438 = vmatprep.subr.mxu0 0.0
        %439 = vmatpush1.msra.mxu0 0.0
        %440 = vmatprep.subr.mxu0 0.0
        %441 = vmatpush1.msra.mxu0 0.0
        %442 = vmatprep.subr.mxu0 0.0
        %443 = vmatpush1.msra.mxu0 0.0
        %444 = vmatprep.subr.mxu0 0.0
        %445 = vmatpush1.msra.mxu0 0.0
        %446 = vmatprep.subr.mxu0 0.0
        %447 = vmatpush1.msra.mxu0 0.0
        %448 = vmatprep.subr.mxu0 0.0
        %449 = vmatpush1.msra.mxu0 0.0
        %450 = vmatprep.subr.mxu0 0.0
        %451 = vmatpush1.msra.mxu0 0.0
        %452 = vmatprep.subr.mxu0 0.0
        %453 = vmatpush1.msra.mxu0 0.0
        %454 = vmatprep.subr.mxu0 0.0
        %455 = vmatpush1.msra.mxu0 0.0
        %456 = vmatprep.subr.mxu0 0.0
        %457 = vmatpush1.msra.mxu0 0.0
        %458 = vmatprep.subr.mxu0 0.0
        %459 = vmatpush1.msra.mxu0 0.0
        %460 = vmatprep.subr.mxu0 0.0
        %461 = vmatpush1.msra.mxu0 0.0
        %462 = vmatprep.subr.mxu0 0.0
        %463 = vmatpush1.msra.mxu0 0.0
        %464 = vmatprep.subr.mxu0 0.0
        %465 = vmatpush1.msra.mxu0 0.0
        %466 = vmatprep.subr.mxu0 0.0
        %467 = vmatpush1.msra.mxu0 0.0
        %468 = vmatprep.subr.mxu0 0.0
        %469 = vmatpush1.msra.mxu0 0.0
        %470 = vmatprep.subr.mxu0 0.0
        %471 = vmatpush1.msra.mxu0 0.0
        %472 = vmatprep.subr.mxu0 0.0
        %473 = vmatpush1.msra.mxu0 0.0
        %474 = vmatprep.subr.mxu0 0.0
        %475 = vmatpush1.msra.mxu0 0.0
        %476 = vmatprep.subr.mxu0 0.0
        %477 = vmatpush1.msra.mxu0 0.0
        %478 = vmatprep.subr.mxu0 0.0
        %479 = vmatpush1.msra.mxu0 0.0
        %480 = vmatprep.mubr.f32.mxu0 0.0
        %481 = vmatmul.mubr.f32.gmra.mrb[0].mxu0 %v408
        %v482 = vpop.f32.mrb[0].mxu0
        %v483 = vadd.f32 0.0, %v482
        %v484 = vpop.f32.mrb[0].mxu0
        %485 = vmatprep.mubr.f32.mxu0 0.0
        %486 = vmatmul.mubr.f32.gmra.mrb[0].mxu0 %v410
        %v487 = vpop.f32.mrb[0].mxu0
        %v488 = vadd.f32 0.0, %v487
        %v489 = vpop.f32.mrb[0].mxu0
        %490 = vmatprep.mubr.f32.mxu0 0.0
        %491 = vmatmul.mubr.f32.gmra.mrb[0].mxu0 %v412
        %v492 = vpop.f32.mrb[0].mxu0
        %v493 = vadd.f32 0.0, %v492
        %v494 = vpop.f32.mrb[0].mxu0
        %495 = vmatprep.mubr.f32.mxu0 0.0
        %496 = vmatmul.mubr.f32.gmra.mrb[0].mxu0 %v414
        %v497 = vpop.f32.mrb[0].mxu0
        %v498 = vadd.f32 0.0, %v497
        %v499 = vpop.f32.mrb[0].mxu0
        %500 = vdwg.mxu0
        %v501 = vsel %vm407, %v374, 0
        %v503 = vsel %vm407, %v375, 0
        %v505 = vsel %vm407, %v376, 0
        %v507 = vsel %vm407, %v377, 0
        %509 = vmatprep.subr.mxu0 0.0
        %510 = vmatpush1.msra.mxu0 %v378
        %511 = vmatprep.subr.mxu0 0.0
        %512 = vmatpush1.msra.mxu0 %v379
        %513 = vmatprep.subr.mxu0 0.0
        %514 = vmatpush1.msra.mxu0 %v380
        %515 = vmatprep.subr.mxu0 0.0
        %516 = vmatpush1.msra.mxu0 %v381
        %517 = vmatprep.subr.mxu0 0.0
        %518 = vmatpush1.msra.mxu0 %v382
        %519 = vmatprep.subr.mxu0 0.0
        %520 = vmatpush1.msra.mxu0 %v383
        %521 = vmatprep.subr.mxu0 0.0
        %522 = vmatpush1.msra.mxu0 %v384
        %523 = vmatprep.subr.mxu0 0.0
        %524 = vmatpush1.msra.mxu0 %v385
        %525 = vmatprep.subr.mxu0 0.0
        %526 = vmatpush1.msra.mxu0 0.0
        %527 = vmatprep.subr.mxu0 0.0
        %528 = vmatpush1.msra.mxu0 0.0
        %529 = vmatprep.subr.mxu0 0.0
        %530 = vmatpush1.msra.mxu0 0.0
        %531 = vmatprep.subr.mxu0 0.0
        %532 = vmatpush1.msra.mxu0 0.0
        %533 = vmatprep.subr.mxu0 0.0
        %534 = vmatpush1.msra.mxu0 0.0
        %535 = vmatprep.subr.mxu0 0.0
        %536 = vmatpush1.msra.mxu0 0.0
        %537 = vmatprep.subr.mxu0 0.0
        %538 = vmatpush1.msra.mxu0 0.0
        %539 = vmatprep.subr.mxu0 0.0
        %540 = vmatpush1.msra.mxu0 0.0
        %541 = vmatprep.subr.mxu0 0.0
        %542 = vmatpush1.msra.mxu0 0.0
        %543 = vmatprep.subr.mxu0 0.0
        %544 = vmatpush1.msra.mxu0 0.0
        %545 = vmatprep.subr.mxu0 0.0
        %546 = vmatpush1.msra.mxu0 0.0
        %547 = vmatprep.subr.mxu0 0.0
        %548 = vmatpush1.msra.mxu0 0.0
        %549 = vmatprep.subr.mxu0 0.0
        %550 = vmatpush1.msra.mxu0 0.0
        %551 = vmatprep.subr.mxu0 0.0
        %552 = vmatpush1.msra.mxu0 0.0
        %553 = vmatprep.subr.mxu0 0.0
        %554 = vmatpush1.msra.mxu0 0.0
        %555 = vmatprep.subr.mxu0 0.0
        %556 = vmatpush1.msra.mxu0 0.0
        %557 = vmatprep.subr.mxu0 0.0
        %558 = vmatpush1.msra.mxu0 0.0
        %559 = vmatprep.subr.mxu0 0.0
        %560 = vmatpush1.msra.mxu0 0.0
        %561 = vmatprep.subr.mxu0 0.0
        %562 = vmatpush1.msra.mxu0 0.0
        %563 = vmatprep.subr.mxu0 0.0
        %564 = vmatpush1.msra.mxu0 0.0
        %565 = vmatprep.subr.mxu0 0.0
        %566 = vmatpush1.msra.mxu0 0.0
        %567 = vmatprep.subr.mxu0 0.0
        %568 = vmatpush1.msra.mxu0 0.0
        %569 = vmatprep.subr.mxu0 0.0
        %570 = vmatpush1.msra.mxu0 0.0
        %571 = vmatprep.subr.mxu0 0.0
        %572 = vmatpush1.msra.mxu0 0.0
        %573 = vmatprep.mubr.f32.mxu0 0.0
        %574 = vmatmul.mubr.f32.gmra.mrb[0].mxu0 %v501
        %v575 = vpop.f32.mrb[0].mxu0
        %v576 = vadd.f32 %v483, %v575
        %v577 = vpop.f32.mrb[0].mxu0
        %578 = vmatprep.mubr.f32.mxu0 0.0
        %579 = vmatmul.mubr.f32.gmra.mrb[0].mxu0 %v503
        %v580 = vpop.f32.mrb[0].mxu0
        %v581 = vadd.f32 %v488, %v580
        %v582 = vpop.f32.mrb[0].mxu0
        %583 = vmatprep.mubr.f32.mxu0 0.0
        %584 = vmatmul.mubr.f32.gmra.mrb[0].mxu0 %v505
        %v585 = vpop.f32.mrb[0].mxu0
        %v586 = vadd.f32 %v493, %v585
        %v587 = vpop.f32.mrb[0].mxu0
        %588 = vmatprep.mubr.f32.mxu0 0.0
        %589 = vmatmul.mubr.f32.gmra.mrb[0].mxu0 %v507
        %v590 = vpop.f32.mrb[0].mxu0
        %v591 = vadd.f32 %v498, %v590
        %v592 = vpop.f32.mrb[0].mxu0
        %593 = vdwg.mxu0
        %s594 = scalar_lea.vmem [#allocation2], 128
        %v595 = vld [vmem:[%s594] sm:$0xff]
        %v596 = vld [vmem:[%s594 + $0x8] sm:$0xff]
        %v597 = vld [vmem:[%s594 + $0x10] sm:$0xff]
        %v598 = vld [vmem:[%s594 + $0x18] sm:$0xff]
        %v599 = vld [vmem:[%s594 + $0x20] sm:$0xff]
        %v600 = vld [vmem:[%s594 + $0x28] sm:$0xff]
        %v601 = vld [vmem:[%s594 + $0x30] sm:$0xff]
        %v602 = vld [vmem:[%s594 + $0x38] sm:$0xff]
        %vm603 = vcmask 1045504
        %v604 = vrot.slane %v374, 2
        %v605 = vrot.slane %v375, 2
        %v606 = vsel %vm603, %v604, %v605
        %v607 = vrot.slane %v376, 2
        %v608 = vsel %vm603, %v605, %v607
        %v609 = vrot.slane %v377, 2
        %v610 = vsel %vm603, %v607, %v609
        %v611 = vsel %vm407, %v606, 0
        %v613 = vsel %vm407, %v608, 0
        %v615 = vsel %vm407, %v610, 0
        %v617 = vsel %vm407, %v609, 0
        %619 = vmatprep.subr.mxu0 0.0
        %620 = vmatpush1.msra.mxu0 %v595
        %621 = vmatprep.subr.mxu0 0.0
        %622 = vmatpush1.msra.mxu0 %v596
        %623 = vmatprep.subr.mxu0 0.0
        %624 = vmatpush1.msra.mxu0 %v597
        %625 = vmatprep.subr.mxu0 0.0
        %626 = vmatpush1.msra.mxu0 %v598
        %627 = vmatprep.subr.mxu0 0.0
        %628 = vmatpush1.msra.mxu0 %v599
        %629 = vmatprep.subr.mxu0 0.0
        %630 = vmatpush1.msra.mxu0 %v600
        %631 = vmatprep.subr.mxu0 0.0
        %632 = vmatpush1.msra.mxu0 %v601
        %633 = vmatprep.subr.mxu0 0.0
        %634 = vmatpush1.msra.mxu0 %v602
        %635 = vmatprep.subr.mxu0 0.0
        %636 = vmatpush1.msra.mxu0 0.0
        %637 = vmatprep.subr.mxu0 0.0
        %638 = vmatpush1.msra.mxu0 0.0
        %639 = vmatprep.subr.mxu0 0.0
        %640 = vmatpush1.msra.mxu0 0.0
        %641 = vmatprep.subr.mxu0 0.0
        %642 = vmatpush1.msra.mxu0 0.0
        %643 = vmatprep.subr.mxu0 0.0
        %644 = vmatpush1.msra.mxu0 0.0
        %645 = vmatprep.subr.mxu0 0.0
        %646 = vmatpush1.msra.mxu0 0.0
        %647 = vmatprep.subr.mxu0 0.0
        %648 = vmatpush1.msra.mxu0 0.0
        %649 = vmatprep.subr.mxu0 0.0
        %650 = vmatpush1.msra.mxu0 0.0
        %651 = vmatprep.subr.mxu0 0.0
        %652 = vmatpush1.msra.mxu0 0.0
        %653 = vmatprep.subr.mxu0 0.0
        %654 = vmatpush1.msra.mxu0 0.0
        %655 = vmatprep.subr.mxu0 0.0
        %656 = vmatpush1.msra.mxu0 0.0
        %657 = vmatprep.subr.mxu0 0.0
        %658 = vmatpush1.msra.mxu0 0.0
        %659 = vmatprep.subr.mxu0 0.0
        %660 = vmatpush1.msra.mxu0 0.0
        %661 = vmatprep.subr.mxu0 0.0
        %662 = vmatpush1.msra.mxu0 0.0
        %663 = vmatprep.subr.mxu0 0.0
        %664 = vmatpush1.msra.mxu0 0.0
        %665 = vmatprep.subr.mxu0 0.0
        %666 = vmatpush1.msra.mxu0 0.0
        %667 = vmatprep.subr.mxu0 0.0
        %668 = vmatpush1.msra.mxu0 0.0
        %669 = vmatprep.subr.mxu0 0.0
        %670 = vmatpush1.msra.mxu0 0.0
        %671 = vmatprep.subr.mxu0 0.0
        %672 = vmatpush1.msra.mxu0 0.0
        %673 = vmatprep.subr.mxu0 0.0
        %674 = vmatpush1.msra.mxu0 0.0
        %675 = vmatprep.subr.mxu0 0.0
        %676 = vmatpush1.msra.mxu0 0.0
        %677 = vmatprep.subr.mxu0 0.0
        %678 = vmatpush1.msra.mxu0 0.0
        %679 = vmatprep.subr.mxu0 0.0
        %680 = vmatpush1.msra.mxu0 0.0
        %681 = vmatprep.subr.mxu0 0.0
        %682 = vmatpush1.msra.mxu0 0.0
        %683 = vmatprep.mubr.f32.mxu0 0.0
        %684 = vmatmul.mubr.f32.gmra.mrb[0].mxu0 %v611
        %v685 = vpop.f32.mrb[0].mxu0
        %v686 = vadd.f32 0.0, %v685
        %v687 = vpop.f32.mrb[0].mxu0
        %688 = vmatprep.mubr.f32.mxu0 0.0
        %689 = vmatmul.mubr.f32.gmra.mrb[0].mxu0 %v613
        %v690 = vpop.f32.mrb[0].mxu0
        %v691 = vadd.f32 0.0, %v690
        %v692 = vpop.f32.mrb[0].mxu0
        %693 = vmatprep.mubr.f32.mxu0 0.0
        %694 = vmatmul.mubr.f32.gmra.mrb[0].mxu0 %v615
        %v695 = vpop.f32.mrb[0].mxu0
        %v696 = vadd.f32 0.0, %v695
        %v697 = vpop.f32.mrb[0].mxu0
        %698 = vmatprep.mubr.f32.mxu0 0.0
        %699 = vmatmul.mubr.f32.gmra.mrb[0].mxu0 %v617
        %v700 = vpop.f32.mrb[0].mxu0
        %v701 = vadd.f32 0.0, %v700
        %v702 = vpop.f32.mrb[0].mxu0
        %703 = vdwg.mxu0
        %v704 = vadd.f32 %v576, %v686
        %v705 = vadd.f32 %v581, %v691
        %v706 = vadd.f32 %v586, %v696
        %v707 = vadd.f32 %v591, %v701
        %v708 = vld [vmem:[%s4] sm:$0x1]
        %v710 = vlaneseq
        %v711 = vshrl.u32 %v710, 7
        %v712 = vsub.s32 0, %v711
        %v713 = vrot.slane %v708, %v712
        %v715 = vadd.f32 %v704, %v713
        %v716 = vadd.f32 %v705, %v713
        %v717 = vadd.f32 %v706, %v713
        %v718 = vadd.f32 %v707, %v713
        %vm719 = vcmp.gt.f32.partialorder %v715, 0.0
        %vm720 = vcmp.gt.f32.partialorder %v716, 0.0
        %vm721 = vcmp.gt.f32.partialorder %v717, 0.0
        %vm722 = vcmp.gt.f32.partialorder %v718, 0.0
        %v723 = vmin.f32 %v715, 0.0
        %v724 = vmin.f32 %v716, 0.0
        %v725 = vmin.f32 %v717, 0.0
        %v726 = vmin.f32 %v718, 0.0
        %v727 = vmul.f32 %v723, 1.442695
        %v728 = vpow.pop %v727
        %v729 = vmul.f32 %v724, 1.442695
        %v730 = vpow.pop %v729
        %v731 = vmul.f32 %v725, 1.442695
        %v732 = vpow.pop %v731
        %v733 = vmul.f32 %v726, 1.442695
        %v734 = vpow.pop %v733
        %v735 = vsub.f32 %v728, 1.0
        %v736 = vsub.f32 %v730, 1.0
        %v737 = vsub.f32 %v732, 1.0
        %v738 = vsub.f32 %v734, 1.0
        %v739 = vsel %vm719, %v715, %v735
        %v740 = vsel %vm720, %v716, %v736
        %v741 = vsel %vm721, %v717, %v737
        %v742 = vsel %vm722, %v718, %v738
        %743 = vst [vmem:[%s239] sm:$0xff] %v739
        %744 = vst [vmem:[%s239 + $0x8] sm:$0xff] %v740
        %745 = vst [vmem:[%s239 + $0x10] sm:$0xff] %v741
        %746 = vst [vmem:[%s239 + $0x18] sm:$0x3] %v742
        %p747 = scmp.lt.s32.totalorder %s17, 1
        %s748 = scalar_select %p747, %s17, 1
        %s749 = smul.addr %s748, 4
        %s750 = smul.addr %s749, 8
        %s751 = scalar_lea.vmem %s5, %s750
        // Predicated region
        $region45: #{tpu_custom_call.1} parent=39 // pred_check
          %p752 = pneg %p145
        $region46: #{tpu_custom_call.1} parent=39 // pred_check_branch
          %754 = sbr.rel (%p752) target = $region48
        $region47: #{tpu_custom_call.1} parent=39 // pred_region
          _
        $region48: #{tpu_custom_call.1} parent=39 // pred_fallthru
          _
      $region40: #{tpu_custom_call.1} parent=5 // pred_fallthru
        _
      %p755 = scmp.le.s32.totalorder 2, %s12
      // Predicated region
      $region49: #{tpu_custom_call.1} parent=5 // pred_check
        %p756 = pneg %p755
      $region50: #{tpu_custom_call.1} parent=5 // pred_check_branch
        %758 = sbr.rel (%p756) target = $region52
      $region51: #{tpu_custom_call.1} parent=5 // pred_region
        %s759 = ssub.s32 %s12, 2
        // Predicated region
        $region53: #{tpu_custom_call.1} parent=51 // pred_check
          %p760 = pneg %p151
        $region54: #{tpu_custom_call.1} parent=51 // pred_check_branch
          %762 = sbr.rel (%p760) target = $region56
        $region55: #{tpu_custom_call.1} parent=51 // pred_region
          %p763 = scmp.lt.s32.totalorder %s18, 1
          %s764 = scalar_select %p763, %s18, 1
          %s765 = smul.addr %s764, 4
          %s766 = smul.addr %s765, 8
          %s767 = scalar_lea.vmem %s5, %s766
        $region56: #{tpu_custom_call.1} parent=51 // pred_fallthru
          _
      $region52: #{tpu_custom_call.1} parent=5 // pred_fallthru
        _
    $region6: #{tpu_custom_call.1} parent=1 // loop_footer
      %s16 = sadd.s32 1, %s12
    $region7: #{tpu_custom_call.1} parent=1 // loop_footer_branch
      %11 = sbr.rel target = $region3
    $region8: #{tpu_custom_call.1} parent=1 // loop_exit
      _
    %768 = vsyncpa [#allocation3], 1
    %s769 = scalar_lea.sflag [#allocation3], 1
    %770 = vsyncpa %s769, 1

</llo_original>
